<compile_context>
chip_gen: v7x
topology: tpu7x:2x2x1
jax: 0.10.0
libtpu: 0.0.40
codegen_flags: <defaults>
</compile_context>

<pallas_src>
import functools

import jax
import jax.numpy as jnp
from jax.experimental import pallas as pl
from jax.experimental.pallas import tpu as pltpu

N_EMBD = 4          # matches the module's global `n_embd = 4`
DROPOUT_P = 0.1     # unused at inference (identity)


def _round_up(x, m):
    return (x + m - 1) // m * m


def expert_kernel(x_ref, w1_ref, b1_ref, w2_ref, b2_ref, o_ref):
    """Two MXU matmuls + fused VPU bias-add / ReLU epilogue on one row tile.

    x_ref:  (TM, C)   unpadded token tile (lane-padded to CP in VMEM below)
    w1_ref: (CP, HP)  lane-padded, VMEM-resident
    b1_ref: (1,  HP)
    w2_ref: (HP, CP)
    b2_ref: (1,  CP)
    o_ref:  (TM, C)
    """
    C = x_ref.shape[-1]
    CP = w1_ref.shape[0]

    x = x_ref[...]                                                   # (TM, C)
    if CP != C:
        # Cheap in-VMEM lane pad (zero columns are mathematically inert because the
        # corresponding padded weight rows/cols and bias entries are zero).
        zeros = jnp.zeros((x.shape[0], CP - C), x.dtype)
        x = jnp.concatenate([x, zeros], axis=-1)                     # (TM, CP)

    h = jnp.dot(x, w1_ref[...], preferred_element_type=jnp.float32)  # (TM, HP)
    h = jnp.maximum(h + b1_ref[...], 0.0)                            # bias + ReLU
    y = jnp.dot(h.astype(w2_ref.dtype), w2_ref[...],
                preferred_element_type=jnp.float32)                  # (TM, CP)
    y = y + b2_ref[...]
    # Store only the real C columns; Dropout(eval) == identity.
    o_ref[...] = y[:, :C].astype(o_ref.dtype)


@functools.partial(jax.jit, static_argnames=("tm",))
def expert_forward(x, w1, b1, w2, b2, *, tm=1024):
    """x: (B, T, C). w1: (C, 4C), b1: (1, 4C), w2: (4C, C), b2: (1, C).

    Weights are stored pre-transposed to (in, out) relative to nn.Linear's (out, in).
    """
    B, T, C = x.shape
    H = w1.shape[1]
    M = B * T

    # Lane padding only for the tiny, VMEM-resident weights/biases.
    CP = _round_up(C, 128)
    HP = _round_up(H, 128)

    # Packed-sublane multiple for the activation dtype: 8 f32 / 16 bf16 / 32 int8.
    sub = 8 * (4 // jnp.dtype(x.dtype).itemsize)

    # Row tiling: at least 2 tiles (both v7x TensorCores get work), balanced sizes,
    # rounded to the sublane multiple.
    n_tiles = max(2, pl.cdiv(M, tm))
    TM = _round_up(pl.cdiv(M, n_tiles), sub)
    MP = _round_up(M, TM)

    xm = x.reshape(M, C)
    if MP != M:
        xm = jnp.pad(xm, ((0, MP - M), (0, 0)))     # rows only; no lane padding in HBM

    w1p = jnp.pad(w1, ((0, CP - C), (0, HP - H)))
    b1p = jnp.pad(b1, ((0, 0), (0, HP - H)))
    w2p = jnp.pad(w2, ((0, HP - H), (0, CP - C)))
    b2p = jnp.pad(b2, ((0, 0), (0, CP - C)))

    grid = (MP // TM,)

    out = pl.pallas_call(
        expert_kernel,
        out_shape=jax.ShapeDtypeStruct((MP, C), x.dtype),
        grid_spec=pltpu.PrefetchScalarGridSpec(
            num_scalar_prefetch=0,
            grid=grid,
            in_specs=[
                pl.BlockSpec((TM, C), lambda i: (i, 0)),    # x: pipelined over M, no lane pad
                pl.BlockSpec((CP, HP), lambda i: (0, 0)),   # w1: VMEM-resident
                pl.BlockSpec((1, HP), lambda i: (0, 0)),    # b1: VMEM-resident
                pl.BlockSpec((HP, CP), lambda i: (0, 0)),   # w2: VMEM-resident
                pl.BlockSpec((1, CP), lambda i: (0, 0)),    # b2: VMEM-resident
            ],
            out_specs=pl.BlockSpec((TM, C), lambda i: (i, 0)),
        ),
        compiler_params=pltpu.CompilerParams(
            # Independent M tiles -> shard across the 2 TCs on v7x.
            dimension_semantics=("parallel",),
            # Explicit limit: keeps the weight-resident plan working under v5e's
            # 16 MiB default scoped-VMEM limit (and is <= defaults on v6e/v7x).
            vmem_limit_bytes=32 * 1024 * 1024,
        ),
    )(xm, w1p, b1p, w2p, b2p)

    if MP != M:
        out = out[:M]
    return out.reshape(B, T, C)


def init_expert_params(key, n_embd, dtype=jnp.float32):
    """Deterministic init mimicking nn.Linear's uniform(-1/sqrt(fan_in), 1/sqrt(fan_in))."""
    k1, k2, k3, k4 = jax.random.split(key, 4)
    hidden = 4 * n_embd
    lim1 = 1.0 / jnp.sqrt(n_embd)
    lim2 = 1.0 / jnp.sqrt(hidden)
    # Stored already transposed to (in, out) for the kernel.
    w1 = jax.random.uniform(k1, (n_embd, hidden), dtype, minval=-lim1, maxval=lim1)
    b1 = jax.random.uniform(k2, (1, hidden), dtype, minval=-lim1, maxval=lim1)
    w2 = jax.random.uniform(k3, (hidden, n_embd), dtype, minval=-lim2, maxval=lim2)
    b2 = jax.random.uniform(k4, (1, n_embd), dtype, minval=-lim2, maxval=lim2)
    return w1, b1, w2, b2


if __name__ == "__main__":
    key = jax.random.PRNGKey(0)
    k_x, k_p = jax.random.split(key)

    B, T, C = 2, 8, N_EMBD
    x = jax.random.normal(k_x, (B, T, C), dtype=jnp.float32)
    w1, b1, w2, b2 = init_expert_params(k_p, C)

    y = expert_forward(x, w1, b1, w2, b2)
    jax.block_until_ready(y)

    # Sanity check against plain-JAX reference (eval-mode dropout == identity).
    ref = jnp.maximum(x.reshape(-1, C) @ w1 + b1, 0.0) @ w2 + b2
    assert y.shape == (B, T, C)
    assert jnp.allclose(y.reshape(-1, C), ref, atol=1e-5, rtol=1e-5)

    print("KERNEL_OK")
</pallas_src>

<mosaic_0001>
module attributes {stable_mosaic.version = 11 : i64} {
  func.func @expert_kernel(%arg0: i32, %arg1: memref<8x4xf32, #tpu.memory_space<vmem>>, %arg2: memref<128x128xf32, #tpu.memory_space<vmem>>, %arg3: memref<1x128xf32, #tpu.memory_space<vmem>>, %arg4: memref<128x128xf32, #tpu.memory_space<vmem>>, %arg5: memref<1x128xf32, #tpu.memory_space<vmem>>, %arg6: memref<8x4xf32, #tpu.memory_space<vmem>>) attributes {dimension_semantics = [#tpu.dimension_semantics<parallel>], iteration_bounds = array<i64: 2>, scalar_prefetch = 0 : i64, scratch_operands = 0 : i64, tpu.core_type = #tpu.core_type<tc>, window_params = [{transform_indices = @transform_0, window_bounds = array<i64: 8, 4>}, {pipeline_mode = #tpu.pipeline_mode<synchronous>, transform_indices = @transform_1, window_bounds = array<i64: 128, 128>}, {pipeline_mode = #tpu.pipeline_mode<synchronous>, transform_indices = @transform_2, window_bounds = array<i64: 1, 128>}, {pipeline_mode = #tpu.pipeline_mode<synchronous>, transform_indices = @transform_3, window_bounds = array<i64: 128, 128>}, {pipeline_mode = #tpu.pipeline_mode<synchronous>, transform_indices = @transform_4, window_bounds = array<i64: 1, 128>}, {transform_indices = @transform_5, window_bounds = array<i64: 8, 4>}]} {
    %c0 = arith.constant 0 : index
    %c0_0 = arith.constant 0 : index
    %0 = vector.load %arg1[%c0, %c0_0] : memref<8x4xf32, #tpu.memory_space<vmem>>, vector<8x4xf32>
    %cst = arith.constant 0.000000e+00 : f32
    %1 = vector.broadcast %cst : f32 to vector<8x124xf32>
    %2 = tpu.concatenate %0, %1 in 1 : vector<8x4xf32>, vector<8x124xf32> -> vector<8x128xf32>
    %c0_1 = arith.constant 0 : index
    %c0_2 = arith.constant 0 : index
    %3 = vector.load %arg2[%c0_1, %c0_2] : memref<128x128xf32, #tpu.memory_space<vmem>>, vector<128x128xf32>
    %cst_3 = arith.constant dense<0.000000e+00> : vector<8x128xf32>
    %4 = tpu.matmul %2, %3, %cst_3 {dimension_numbers = #tpu.dot_dimension_numbers<[1], [0], [0], [1], [0, 0, 1, 1], [], []>} : vector<8x128xf32>, vector<128x128xf32>, vector<8x128xf32> -> vector<8x128xf32>
    %c0_4 = arith.constant 0 : index
    %c0_5 = arith.constant 0 : index
    %5 = vector.load %arg3[%c0_4, %c0_5] : memref<1x128xf32, #tpu.memory_space<vmem>>, vector<1x128xf32>
    %6 = vector.broadcast %5 : vector<1x128xf32> to vector<8x128xf32>
    %7 = arith.addf %4, %6 : vector<8x128xf32>
    %cst_6 = arith.constant 0.000000e+00 : f32
    %8 = vector.broadcast %cst_6 : f32 to vector<8x128xf32>
    %9 = arith.maximumf %7, %8 : vector<8x128xf32>
    %c0_7 = arith.constant 0 : index
    %c0_8 = arith.constant 0 : index
    %10 = vector.load %arg4[%c0_7, %c0_8] : memref<128x128xf32, #tpu.memory_space<vmem>>, vector<128x128xf32>
    %cst_9 = arith.constant dense<0.000000e+00> : vector<8x128xf32>
    %11 = tpu.matmul %9, %10, %cst_9 {dimension_numbers = #tpu.dot_dimension_numbers<[1], [0], [0], [1], [0, 0, 1, 1], [], []>} : vector<8x128xf32>, vector<128x128xf32>, vector<8x128xf32> -> vector<8x128xf32>
    %c0_10 = arith.constant 0 : index
    %c0_11 = arith.constant 0 : index
    %12 = vector.load %arg5[%c0_10, %c0_11] : memref<1x128xf32, #tpu.memory_space<vmem>>, vector<1x128xf32>
    %13 = vector.broadcast %12 : vector<1x128xf32> to vector<8x128xf32>
    %14 = arith.addf %11, %13 : vector<8x128xf32>
    %15 = vector.extract_strided_slice %14 {offsets = [0, 0], sizes = [8, 4], strides = [1, 1]} : vector<8x128xf32> to vector<8x4xf32>
    %c0_12 = arith.constant 0 : index
    %c0_13 = arith.constant 0 : index
    %16 = vector.load %arg6[%c0_12, %c0_13] : memref<8x4xf32, #tpu.memory_space<vmem>>, vector<8x4xf32>
    tpu.vector_store %arg6[%c0_12, %c0_13], %15 {strides = array<i32>} : memref<8x4xf32, #tpu.memory_space<vmem>>, vector<8x4xf32>,
    return
  }
  func.func @transform_0(%arg0: i32) -> (i32, i32) {
    %c0_i32 = arith.constant 0 : i32
    %c0_i32_0 = arith.constant 0 : i32
    return %arg0, %c0_i32 : i32, i32
  }
  func.func @transform_1(%arg0: i32) -> (i32, i32) {
    %c0_i32 = arith.constant 0 : i32
    %c0_i32_0 = arith.constant 0 : i32
    %c0_i32_1 = arith.constant 0 : i32
    return %c0_i32, %c0_i32_0 : i32, i32
  }
  func.func @transform_2(%arg0: i32) -> (i32, i32) {
    %c0_i32 = arith.constant 0 : i32
    %c0_i32_0 = arith.constant 0 : i32
    %c0_i32_1 = arith.constant 0 : i32
    return %c0_i32, %c0_i32_0 : i32, i32
  }
  func.func @transform_3(%arg0: i32) -> (i32, i32) {
    %c0_i32 = arith.constant 0 : i32
    %c0_i32_0 = arith.constant 0 : i32
    %c0_i32_1 = arith.constant 0 : i32
    return %c0_i32, %c0_i32_0 : i32, i32
  }
  func.func @transform_4(%arg0: i32) -> (i32, i32) {
    %c0_i32 = arith.constant 0 : i32
    %c0_i32_0 = arith.constant 0 : i32
    %c0_i32_1 = arith.constant 0 : i32
    return %c0_i32, %c0_i32_0 : i32, i32
  }
  func.func @transform_5(%arg0: i32) -> (i32, i32) {
    %c0_i32 = arith.constant 0 : i32
    %c0_i32_0 = arith.constant 0 : i32
    return %arg0, %c0_i32 : i32, i32
  }
}

</mosaic_0001>

<llo_original>
// kernel: expert_forward.1
$region0: #{expert_forward.1}
  #allocation0 [shape = 'u32[]', space=smem, size = 0x4, offset = 0x4, fixed_abs, tag = 'smem constant byte address 0x4 - core index']
  #allocation1 [shape = 'u32[144,128]{1,0:T(1,128)}', space=vmem, size = 0x12000, scoped, tag = 'internal scratch']
  %s0 = inlined_call_operand.vmem [shape: f32[16,4], index: 0, kind: input, shape index: {}]
  %s1 = inlined_call_operand.vmem [shape: f32[128,128], index: 1, kind: input, shape index: {}]
  %s2 = inlined_call_operand.vmem [shape: f32[1,128], index: 2, kind: input, shape index: {}]
  %s3 = inlined_call_operand.vmem [shape: f32[128,128], index: 3, kind: input, shape index: {}]
  %s4 = inlined_call_operand.vmem [shape: f32[1,128], index: 4, kind: input, shape index: {}]
  %s5 = inlined_call_operand.vmem [shape: f32[16,4], index: 5, kind: output, shape index: {}]
  %s6 = sld [smem:[#allocation0]]
  $region53: #{expert_forward.1} parent=0
    _
  %s8 = ssub.s32 1, %s6
  %s9 = scalar_select 0, %s8, %s6
  loop: start=0, step=1, limit=4
  $region2: #{expert_forward.1} parent=0 // loop_pre_header
    _
  $region3: #{expert_forward.1} parent=0 // loop_header
    %s11 = sphi 0, %s15
    %p12 = scmp.ge.s32.totalorder %s11, 4
    %s21 = sphi 0, %s23
    %s24 = sphi 0, %s21
    %s25 = sphi 0, %s24
    %s41 = sphi 0, %s25
    %s45 = sphi 0, %s45
    %s47 = sphi 0, %s45
    %s48 = sphi 0, %s47
    %s62 = sphi 0, %s48
    %s66 = sphi 0, %s66
    %s68 = sphi 0, %s66
    %s69 = sphi 0, %s68
    %s83 = sphi 0, %s69
    %s87 = sphi 0, %s87
    %s89 = sphi 0, %s87
    %s90 = sphi 0, %s89
    %s104 = sphi 0, %s90
    %s108 = sphi 0, %s108
    %s110 = sphi 0, %s108
    %s111 = sphi 0, %s110
    %s125 = sphi 0, %s111
    %s131 = sphi 0, %s133
    %s134 = sphi 0, %s131
    %s135 = sphi 0, %s134
    %s151 = sphi 0, %s135
  $region4: #{expert_forward.1} parent=0 // loop_header_branch
    %14 = sbr.rel (%p12) target = $region8
  $region5: #{expert_forward.1} parent=0 // loop_body
    %s16 = ssub.s32 %s11, 1
    %s17 = ssub.s32 %s11, 2
    %s18 = sadd.s32 %s11, 1
    %s19 = ssub.s32 %s11, %s18
    %p20 = scmp.eq.s32.totalorder %s19, 0
    %s22 = sadd.s32 %s21, 1
    %s23 = scalar_select %p20, %s21, %s22
    %p26 = pneg %p20
    %p27 = scmp.eq.s32.totalorder %s11, 1
    %p28 = por %p26, %p27
    %p29 = scmp.ne.s32.totalorder %s21, %s24
    %p30 = scmp.eq.s32.totalorder %s11, 0
    %p31 = por %p29, %p30
    %p32 = scmp.ne.s32.totalorder %s21, %s24
    %p33 = scmp.eq.s32.totalorder %s16, 1
    %p34 = por %p32, %p33
    %p35 = scmp.ne.s32.totalorder %s24, %s25
    %p36 = scmp.eq.s32.totalorder %s16, 0
    %p37 = por %p35, %p36
    %p38 = scmp.ne.s32.totalorder %s24, %s25
    %p39 = scmp.eq.s32.totalorder %s17, 1
    %p40 = por %p38, %p39
    %p42 = scmp.ne.s32.totalorder %s25, %s41
    %p43 = scmp.eq.s32.totalorder %s17, 0
    %p44 = por %p42, %p43
    %s46 = sadd.s32 %s45, 1
    %p49 = scmp.eq.s32.totalorder %s11, 1
    %p50 = scmp.ne.s32.totalorder %s45, %s47
    %p51 = scmp.eq.s32.totalorder %s11, 0
    %p52 = por %p50, %p51
    %p53 = scmp.ne.s32.totalorder %s45, %s47
    %p54 = scmp.eq.s32.totalorder %s16, 1
    %p55 = por %p53, %p54
    %p56 = scmp.ne.s32.totalorder %s47, %s48
    %p57 = scmp.eq.s32.totalorder %s16, 0
    %p58 = por %p56, %p57
    %p59 = scmp.ne.s32.totalorder %s47, %s48
    %p60 = scmp.eq.s32.totalorder %s17, 1
    %p61 = por %p59, %p60
    %p63 = scmp.ne.s32.totalorder %s48, %s62
    %p64 = scmp.eq.s32.totalorder %s17, 0
    %p65 = por %p63, %p64
    %s67 = sadd.s32 %s66, 1
    %p70 = scmp.eq.s32.totalorder %s11, 1
    %p71 = scmp.ne.s32.totalorder %s66, %s68
    %p72 = scmp.eq.s32.totalorder %s11, 0
    %p73 = por %p71, %p72
    %p74 = scmp.ne.s32.totalorder %s66, %s68
    %p75 = scmp.eq.s32.totalorder %s16, 1
    %p76 = por %p74, %p75
    %p77 = scmp.ne.s32.totalorder %s68, %s69
    %p78 = scmp.eq.s32.totalorder %s16, 0
    %p79 = por %p77, %p78
    %p80 = scmp.ne.s32.totalorder %s68, %s69
    %p81 = scmp.eq.s32.totalorder %s17, 1
    %p82 = por %p80, %p81
    %p84 = scmp.ne.s32.totalorder %s69, %s83
    %p85 = scmp.eq.s32.totalorder %s17, 0
    %p86 = por %p84, %p85
    %s88 = sadd.s32 %s87, 1
    %p91 = scmp.eq.s32.totalorder %s11, 1
    %p92 = scmp.ne.s32.totalorder %s87, %s89
    %p93 = scmp.eq.s32.totalorder %s11, 0
    %p94 = por %p92, %p93
    %p95 = scmp.ne.s32.totalorder %s87, %s89
    %p96 = scmp.eq.s32.totalorder %s16, 1
    %p97 = por %p95, %p96
    %p98 = scmp.ne.s32.totalorder %s89, %s90
    %p99 = scmp.eq.s32.totalorder %s16, 0
    %p100 = por %p98, %p99
    %p101 = scmp.ne.s32.totalorder %s89, %s90
    %p102 = scmp.eq.s32.totalorder %s17, 1
    %p103 = por %p101, %p102
    %p105 = scmp.ne.s32.totalorder %s90, %s104
    %p106 = scmp.eq.s32.totalorder %s17, 0
    %p107 = por %p105, %p106
    %s109 = sadd.s32 %s108, 1
    %p112 = scmp.eq.s32.totalorder %s11, 1
    %p113 = scmp.ne.s32.totalorder %s108, %s110
    %p114 = scmp.eq.s32.totalorder %s11, 0
    %p115 = por %p113, %p114
    %p116 = scmp.ne.s32.totalorder %s108, %s110
    %p117 = scmp.eq.s32.totalorder %s16, 1
    %p118 = por %p116, %p117
    %p119 = scmp.ne.s32.totalorder %s110, %s111
    %p120 = scmp.eq.s32.totalorder %s16, 0
    %p121 = por %p119, %p120
    %p122 = scmp.ne.s32.totalorder %s110, %s111
    %p123 = scmp.eq.s32.totalorder %s17, 1
    %p124 = por %p122, %p123
    %p126 = scmp.ne.s32.totalorder %s111, %s125
    %p127 = scmp.eq.s32.totalorder %s17, 0
    %p128 = por %p126, %p127
    %s129 = ssub.s32 %s11, %s18
    %p130 = scmp.eq.s32.totalorder %s129, 0
    %s132 = sadd.s32 %s131, 1
    %s133 = scalar_select %p130, %s131, %s132
    %p136 = pneg %p130
    %p137 = scmp.eq.s32.totalorder %s11, 1
    %p138 = por %p136, %p137
    %p139 = scmp.ne.s32.totalorder %s131, %s134
    %p140 = scmp.eq.s32.totalorder %s11, 0
    %p141 = por %p139, %p140
    %p142 = scmp.ne.s32.totalorder %s131, %s134
    %p143 = scmp.eq.s32.totalorder %s16, 1
    %p144 = por %p142, %p143
    %p145 = scmp.ne.s32.totalorder %s134, %s135
    %p146 = scmp.eq.s32.totalorder %s16, 0
    %p147 = por %p145, %p146
    %p148 = scmp.ne.s32.totalorder %s134, %s135
    %p149 = scmp.eq.s32.totalorder %s17, 1
    %p150 = por %p148, %p149
    %p152 = scmp.ne.s32.totalorder %s135, %s151
    %p153 = scmp.eq.s32.totalorder %s17, 0
    %p154 = por %p152, %p153
    %p155 = scmp.le.s32.totalorder 1, %s11
    %p156 = scmp.lt.s32.totalorder %s11, 3
    %p157 = pnand %p155, %p156
    %p158 = pneg %p157
    // Predicated region
    $region9: #{expert_forward.1} parent=5 // pred_check
      _
    $region10: #{expert_forward.1} parent=5 // pred_check_branch
      %160 = sbr.rel (%p157) target = $region12
    $region11: #{expert_forward.1} parent=5 // pred_region
      %s161 = ssub.s32 %s11, 1
      // Predicated region
      $region13: #{expert_forward.1} parent=11 // pred_check
        %p162 = pneg %p58
      $region14: #{expert_forward.1} parent=11 // pred_check_branch
        %164 = sbr.rel (%p162) target = $region16
      $region15: #{expert_forward.1} parent=11 // pred_region
        _
      $region16: #{expert_forward.1} parent=11 // pred_fallthru
        _
      // Predicated region
      $region17: #{expert_forward.1} parent=11 // pred_check
        %p165 = pneg %p79
      $region18: #{expert_forward.1} parent=11 // pred_check_branch
        %167 = sbr.rel (%p165) target = $region20
      $region19: #{expert_forward.1} parent=11 // pred_region
        _
      $region20: #{expert_forward.1} parent=11 // pred_fallthru
        _
      // Predicated region
      $region21: #{expert_forward.1} parent=11 // pred_check
        %p168 = pneg %p100
      $region22: #{expert_forward.1} parent=11 // pred_check_branch
        %170 = sbr.rel (%p168) target = $region24
      $region23: #{expert_forward.1} parent=11 // pred_region
        _
      $region24: #{expert_forward.1} parent=11 // pred_fallthru
        _
      // Predicated region
      $region25: #{expert_forward.1} parent=11 // pred_check
        %p171 = pneg %p121
      $region26: #{expert_forward.1} parent=11 // pred_check_branch
        %173 = sbr.rel (%p171) target = $region28
      $region27: #{expert_forward.1} parent=11 // pred_region
        _
      $region28: #{expert_forward.1} parent=11 // pred_fallthru
        _
    $region12: #{expert_forward.1} parent=5 // pred_fallthru
      _
    %p174 = scmp.lt.s32.totalorder %s11, 2
    // Predicated region
    $region29: #{expert_forward.1} parent=5 // pred_check
      %p175 = pneg %p174
    $region30: #{expert_forward.1} parent=5 // pred_check_branch
      %177 = sbr.rel (%p175) target = $region32
    $region31: #{expert_forward.1} parent=5 // pred_region
      // Predicated region
      $region33: #{expert_forward.1} parent=31 // pred_check
        %p178 = pneg %p31
      $region34: #{expert_forward.1} parent=31 // pred_check_branch
        %180 = sbr.rel (%p178) target = $region36
      $region35: #{expert_forward.1} parent=31 // pred_region
        %p181 = scmp.lt.s32.totalorder %s11, 1
        %s182 = scalar_select %p181, %s11, 1
        %s183 = smul.addr %s182, 8
        %s184 = scalar_lea.vmem %s0, %s183
      $region36: #{expert_forward.1} parent=31 // pred_fallthru
        _
    $region32: #{expert_forward.1} parent=5 // pred_fallthru
      _
    %p185 = scmp.le.s32.totalorder 1, %s11
    %p186 = scmp.lt.s32.totalorder %s11, 3
    %p187 = pnand %p185, %p186
    %p188 = pneg %p187
    // Predicated region
    $region37: #{expert_forward.1} parent=5 // pred_check
      _
    $region38: #{expert_forward.1} parent=5 // pred_check_branch
      %190 = sbr.rel (%p187) target = $region40
    $region39: #{expert_forward.1} parent=5 // pred_region
      %s191 = ssub.s32 %s11, 1
      %p192 = scmp.lt.s32.totalorder %s16, 1
      %s193 = scalar_select %p192, %s16, 1
      %s194 = smul.addr %s193, 8
      %s195 = scalar_lea.vmem %s0, %s194
      %p196 = pneg %p37
      %p197 = pneg %p34
      %p198 = pneg %p58
      %p199 = pneg %p55
      %p200 = pneg %p79
      %p201 = pneg %p76
      %p202 = pneg %p100
      %p203 = pneg %p97
      %p204 = pneg %p121
      %p205 = pneg %p118
      %p206 = pneg %p147
      %p207 = pneg %p144
      %p208 = scmp.lt.s32.totalorder %s16, 1
      %s209 = scalar_select %p208, %s16, 1
      %s210 = smul.addr %s209, 8
      %s211 = scalar_lea.vmem %s5, %s210
      %p212 = scmp.lt.s32.totalorder %s16, 1
      %s213 = scalar_select %p212, %s16, 1
      %s214 = smul.addr %s213, 8
      %s215 = scalar_lea.vmem %s0, %s214
      %p216 = scmp.lt.s32.totalorder %s16, 1
      %s217 = scalar_select %p216, %s16, 1
      %s218 = smul.addr %s217, 8
      %s219 = scalar_lea.vmem %s5, %s218
      %v220 = vld [vmem:[%s215] sm:$0xff]
      %vm221 = vcmask 31744
      %v222 = vsel %vm221, %v220, 0.0
      %v223 = vld [vmem:[%s1] sm:$0xff]
      %v224 = vld [vmem:[%s1 + $0x8] sm:$0xff]
      %v225 = vld [vmem:[%s1 + $0x10] sm:$0xff]
      %v226 = vld [vmem:[%s1 + $0x18] sm:$0xff]
      %v227 = vld [vmem:[%s1 + $0x20] sm:$0xff]
      %v228 = vld [vmem:[%s1 + $0x28] sm:$0xff]
      %v229 = vld [vmem:[%s1 + $0x30] sm:$0xff]
      %v230 = vld [vmem:[%s1 + $0x38] sm:$0xff]
      %v231 = vld [vmem:[%s1 + $0x40] sm:$0xff]
      %v232 = vld [vmem:[%s1 + $0x48] sm:$0xff]
      %v233 = vld [vmem:[%s1 + $0x50] sm:$0xff]
      %v234 = vld [vmem:[%s1 + $0x58] sm:$0xff]
      %v235 = vld [vmem:[%s1 + $0x60] sm:$0xff]
      %v236 = vld [vmem:[%s1 + $0x68] sm:$0xff]
      %v237 = vld [vmem:[%s1 + $0x70] sm:$0xff]
      %v238 = vld [vmem:[%s1 + $0x78] sm:$0xff]
      %v239 = vld [vmem:[%s2] sm:$0x1]
      %v241 = vlaneseq
      %v242 = vshrl.u32 %v241, 7
      %v243 = vsub.s32 0, %v242
      %v244 = vrot.slane %v239, %v243
      %246 = vmatprep.subr.mxu0 0.0
      %247 = vmatpush1.msra.mxu0 %v223
      %248 = vmatprep.subr.mxu0 0.0
      %249 = vmatpush1.msra.mxu0 %v224
      %250 = vmatprep.subr.mxu0 0.0
      %251 = vmatpush1.msra.mxu0 %v225
      %252 = vmatprep.subr.mxu0 0.0
      %253 = vmatpush1.msra.mxu0 %v226
      %254 = vmatprep.subr.mxu0 0.0
      %255 = vmatpush1.msra.mxu0 %v227
      %256 = vmatprep.subr.mxu0 0.0
      %257 = vmatpush1.msra.mxu0 %v228
      %258 = vmatprep.subr.mxu0 0.0
      %259 = vmatpush1.msra.mxu0 %v229
      %260 = vmatprep.subr.mxu0 0.0
      %261 = vmatpush1.msra.mxu0 %v230
      %262 = vmatprep.subr.mxu0 0.0
      %263 = vmatpush1.msra.mxu0 %v231
      %264 = vmatprep.subr.mxu0 0.0
      %265 = vmatpush1.msra.mxu0 %v232
      %266 = vmatprep.subr.mxu0 0.0
      %267 = vmatpush1.msra.mxu0 %v233
      %268 = vmatprep.subr.mxu0 0.0
      %269 = vmatpush1.msra.mxu0 %v234
      %270 = vmatprep.subr.mxu0 0.0
      %271 = vmatpush1.msra.mxu0 %v235
      %272 = vmatprep.subr.mxu0 0.0
      %273 = vmatpush1.msra.mxu0 %v236
      %274 = vmatprep.subr.mxu0 0.0
      %275 = vmatpush1.msra.mxu0 %v237
      %276 = vmatprep.subr.mxu0 0.0
      %277 = vmatpush1.msra.mxu0 %v238
      %278 = vmatprep.subr.mxu0 0.0
      %279 = vmatpush1.msra.mxu0 0.0
      %280 = vmatprep.subr.mxu0 0.0
      %281 = vmatpush1.msra.mxu0 0.0
      %282 = vmatprep.subr.mxu0 0.0
      %283 = vmatpush1.msra.mxu0 0.0
      %284 = vmatprep.subr.mxu0 0.0
      %285 = vmatpush1.msra.mxu0 0.0
      %286 = vmatprep.subr.mxu0 0.0
      %287 = vmatpush1.msra.mxu0 0.0
      %288 = vmatprep.subr.mxu0 0.0
      %289 = vmatpush1.msra.mxu0 0.0
      %290 = vmatprep.subr.mxu0 0.0
      %291 = vmatpush1.msra.mxu0 0.0
      %292 = vmatprep.subr.mxu0 0.0
      %293 = vmatpush1.msra.mxu0 0.0
      %294 = vmatprep.subr.mxu0 0.0
      %295 = vmatpush1.msra.mxu0 0.0
      %296 = vmatprep.subr.mxu0 0.0
      %297 = vmatpush1.msra.mxu0 0.0
      %298 = vmatprep.subr.mxu0 0.0
      %299 = vmatpush1.msra.mxu0 0.0
      %300 = vmatprep.subr.mxu0 0.0
      %301 = vmatpush1.msra.mxu0 0.0
      %302 = vmatprep.subr.mxu0 0.0
      %303 = vmatpush1.msra.mxu0 0.0
      %304 = vmatprep.subr.mxu0 0.0
      %305 = vmatpush1.msra.mxu0 0.0
      %306 = vmatprep.subr.mxu0 0.0
      %307 = vmatpush1.msra.mxu0 0.0
      %308 = vmatprep.subr.mxu0 0.0
      %309 = vmatpush1.msra.mxu0 0.0
      %310 = vmatprep.mubr.f32.mxu0 0.0
      %311 = vmatmul.mubr.f32.gmra.mrb[0].mxu0 %v222
      %v312 = vpop.f32.mrb[0].mxu0
      %v313 = vadd.f32 %v244, %v312
      %v314 = vpop.f32.mrb[0].mxu0
      %315 = vdwg.mxu0
      %v316 = vmax.f32 %v313, 0.0
      %v317 = vld [vmem:[%s3] sm:$0xff]
      %v318 = vld [vmem:[%s3 + $0x8] sm:$0xff]
      %v319 = vld [vmem:[%s3 + $0x10] sm:$0xff]
      %v320 = vld [vmem:[%s3 + $0x18] sm:$0xff]
      %v321 = vld [vmem:[%s3 + $0x20] sm:$0xff]
      %v322 = vld [vmem:[%s3 + $0x28] sm:$0xff]
      %v323 = vld [vmem:[%s3 + $0x30] sm:$0xff]
      %v324 = vld [vmem:[%s3 + $0x38] sm:$0xff]
      %v325 = vld [vmem:[%s3 + $0x40] sm:$0xff]
      %v326 = vld [vmem:[%s3 + $0x48] sm:$0xff]
      %v327 = vld [vmem:[%s3 + $0x50] sm:$0xff]
      %v328 = vld [vmem:[%s3 + $0x58] sm:$0xff]
      %v329 = vld [vmem:[%s3 + $0x60] sm:$0xff]
      %v330 = vld [vmem:[%s3 + $0x68] sm:$0xff]
      %v331 = vld [vmem:[%s3 + $0x70] sm:$0xff]
      %v332 = vld [vmem:[%s3 + $0x78] sm:$0xff]
      %v333 = vld [vmem:[%s4] sm:$0x1]
      %v335 = vlaneseq
      %v336 = vshrl.u32 %v335, 7
      %v337 = vsub.s32 0, %v336
      %v338 = vrot.slane %v333, %v337
      %340 = vmatprep.subr.mxu0 0.0
      %341 = vmatpush1.msra.mxu0 %v317
      %342 = vmatprep.subr.mxu0 0.0
      %343 = vmatpush1.msra.mxu0 %v318
      %344 = vmatprep.subr.mxu0 0.0
      %345 = vmatpush1.msra.mxu0 %v319
      %346 = vmatprep.subr.mxu0 0.0
      %347 = vmatpush1.msra.mxu0 %v320
      %348 = vmatprep.subr.mxu0 0.0
      %349 = vmatpush1.msra.mxu0 %v321
      %350 = vmatprep.subr.mxu0 0.0
      %351 = vmatpush1.msra.mxu0 %v322
      %352 = vmatprep.subr.mxu0 0.0
      %353 = vmatpush1.msra.mxu0 %v323
      %354 = vmatprep.subr.mxu0 0.0
      %355 = vmatpush1.msra.mxu0 %v324
      %356 = vmatprep.subr.mxu0 0.0
      %357 = vmatpush1.msra.mxu0 %v325
      %358 = vmatprep.subr.mxu0 0.0
      %359 = vmatpush1.msra.mxu0 %v326
      %360 = vmatprep.subr.mxu0 0.0
      %361 = vmatpush1.msra.mxu0 %v327
      %362 = vmatprep.subr.mxu0 0.0
      %363 = vmatpush1.msra.mxu0 %v328
      %364 = vmatprep.subr.mxu0 0.0
      %365 = vmatpush1.msra.mxu0 %v329
      %366 = vmatprep.subr.mxu0 0.0
      %367 = vmatpush1.msra.mxu0 %v330
      %368 = vmatprep.subr.mxu0 0.0
      %369 = vmatpush1.msra.mxu0 %v331
      %370 = vmatprep.subr.mxu0 0.0
      %371 = vmatpush1.msra.mxu0 %v332
      %372 = vmatprep.subr.mxu0 0.0
      %373 = vmatpush1.msra.mxu0 0.0
      %374 = vmatprep.subr.mxu0 0.0
      %375 = vmatpush1.msra.mxu0 0.0
      %376 = vmatprep.subr.mxu0 0.0
      %377 = vmatpush1.msra.mxu0 0.0
      %378 = vmatprep.subr.mxu0 0.0
      %379 = vmatpush1.msra.mxu0 0.0
      %380 = vmatprep.subr.mxu0 0.0
      %381 = vmatpush1.msra.mxu0 0.0
      %382 = vmatprep.subr.mxu0 0.0
      %383 = vmatpush1.msra.mxu0 0.0
      %384 = vmatprep.subr.mxu0 0.0
      %385 = vmatpush1.msra.mxu0 0.0
      %386 = vmatprep.subr.mxu0 0.0
      %387 = vmatpush1.msra.mxu0 0.0
      %388 = vmatprep.subr.mxu0 0.0
      %389 = vmatpush1.msra.mxu0 0.0
      %390 = vmatprep.subr.mxu0 0.0
      %391 = vmatpush1.msra.mxu0 0.0
      %392 = vmatprep.subr.mxu0 0.0
      %393 = vmatpush1.msra.mxu0 0.0
      %394 = vmatprep.subr.mxu0 0.0
      %395 = vmatpush1.msra.mxu0 0.0
      %396 = vmatprep.subr.mxu0 0.0
      %397 = vmatpush1.msra.mxu0 0.0
      %398 = vmatprep.subr.mxu0 0.0
      %399 = vmatpush1.msra.mxu0 0.0
      %400 = vmatprep.subr.mxu0 0.0
      %401 = vmatpush1.msra.mxu0 0.0
      %402 = vmatprep.subr.mxu0 0.0
      %403 = vmatpush1.msra.mxu0 0.0
      %404 = vmatprep.mubr.f32.mxu0 0.0
      %405 = vmatmul.mubr.f32.gmra.mrb[0].mxu0 %v316
      %v406 = vpop.f32.mrb[0].mxu0
      %v407 = vadd.f32 %v338, %v406
      %v408 = vpop.f32.mrb[0].mxu0
      %409 = vdwg.mxu0
      %410 = vst.msk [vmem:[%s219] sm:$0xff] %vm221, %v407
      %p411 = scmp.lt.s32.totalorder %s16, 1
      %s412 = scalar_select %p411, %s16, 1
      %s413 = smul.addr %s412, 8
      %s414 = scalar_lea.vmem %s5, %s413
      // Predicated region
      $region41: #{expert_forward.1} parent=39 // pred_check
        %p415 = pneg %p144
      $region42: #{expert_forward.1} parent=39 // pred_check_branch
        %417 = sbr.rel (%p415) target = $region44
      $region43: #{expert_forward.1} parent=39 // pred_region
        _
      $region44: #{expert_forward.1} parent=39 // pred_fallthru
        _
    $region40: #{expert_forward.1} parent=5 // pred_fallthru
      _
    %p418 = scmp.le.s32.totalorder 2, %s11
    // Predicated region
    $region45: #{expert_forward.1} parent=5 // pred_check
      %p419 = pneg %p418
    $region46: #{expert_forward.1} parent=5 // pred_check_branch
      %421 = sbr.rel (%p419) target = $region48
    $region47: #{expert_forward.1} parent=5 // pred_region
      %s422 = ssub.s32 %s11, 2
      // Predicated region
      $region49: #{expert_forward.1} parent=47 // pred_check
        %p423 = pneg %p150
      $region50: #{expert_forward.1} parent=47 // pred_check_branch
        %425 = sbr.rel (%p423) target = $region52
      $region51: #{expert_forward.1} parent=47 // pred_region
        %p426 = scmp.lt.s32.totalorder %s17, 1
        %s427 = scalar_select %p426, %s17, 1
        %s428 = smul.addr %s427, 8
        %s429 = scalar_lea.vmem %s5, %s428
      $region52: #{expert_forward.1} parent=47 // pred_fallthru
        _
    $region48: #{expert_forward.1} parent=5 // pred_fallthru
      _
  $region6: #{expert_forward.1} parent=0 // loop_footer
    %s15 = sadd.s32 1, %s11
  $region7: #{expert_forward.1} parent=0 // loop_footer_branch
    %10 = sbr.rel target = $region3
  $region8: #{expert_forward.1} parent=0 // loop_exit
    _

</llo_original>
